<compile_context>
chip_gen: v5e
topology: v5e:2x2
jax: 0.10.0
libtpu: 0.0.40
codegen_flags: <defaults>
</compile_context>

<pallas_src>
import functools

import jax
import jax.numpy as jnp
from jax.experimental import pallas as pl
from jax.experimental.pallas import tpu as pltpu

_LANES = 128
_SUBLANES = 8


def _cdiv(a, b):
    return -(-a // b)


def _round_up(x, m):
    return ((x + m - 1) // m) * m


def _is_v7x():
    try:
        return "v7" in jax.devices()[0].device_kind.lower()
    except Exception:
        return False


def _ppg_loss_kernel(new_ref, old_ref, val_ref, ret_ref, out_ref,
                     kl_acc, aux_acc, *,
                     slab_rows, t_rows, steps_per_split, two_axis, needs_mask,
                     inv_batch, half_inv_num_v):
    if two_axis:
        split = pl.program_id(0)
        step = pl.program_id(1)
        n_steps = pl.num_programs(1)
    else:
        split = jnp.int32(0)
        step = pl.program_id(0)
        n_steps = pl.num_programs(0)

    @pl.when(step == 0)
    def _init():
        kl_acc[...] = jnp.zeros_like(kl_acc)
        aux_acc[...] = jnp.zeros_like(aux_acc)

    # --- categorical KL partial over this (t_rows, 128) tile ------------------
    new_p = new_ref[...].astype(jnp.float32)
    old_p = old_ref[...].astype(jnp.float32)
    # log-difference form: bit-matches the reference and avoids old/new overflow.
    kl_elem = old_p * (jnp.log(old_p) - jnp.log(new_p))

    if needs_mask:
        gstep = split * steps_per_split + step
        valid = slab_rows - gstep * t_rows          # rows of this tile backed by data
        row_id = jax.lax.broadcasted_iota(jnp.int32, kl_elem.shape, 0)
        kl_elem = jnp.where(row_id < valid, kl_elem, 0.0)

    # Fold to one (8,128) vreg per step: pure VPU adds, no per-step XLU reduce.
    kl_acc[...] += jnp.sum(
        kl_elem.reshape(t_rows // _SUBLANES, _SUBLANES, _LANES), axis=0)

    # --- auxiliary value loss: values/returns are VMEM-resident, done once ----
    if two_axis:
        aux_gate = (step == 0) & (split == 0)
    else:
        aux_gate = step == 0

    @pl.when(aux_gate)
    def _aux():
        diff = ret_ref[...].astype(jnp.float32) - val_ref[...].astype(jnp.float32)
        aux_acc[...] = jnp.sum(diff * diff, keepdims=True)          # (1,1)

    # --- finalize: single cross-lane reduce + normalisation --------------------
    @pl.when(step == n_steps - 1)
    def _finalize():
        kl_total = jnp.sum(kl_acc[...], keepdims=True)              # (1,1)
        total = kl_total * inv_batch + aux_acc[...] * half_inv_num_v
        out_ref[...] = jnp.broadcast_to(total, out_ref.shape).astype(out_ref.dtype)


def _lane_dense_slab(x, pad_value):
    """Reshape to [rows, 128]; pads only the unaligned / sub-8-row leftover."""
    flat = x.reshape(-1)
    n = flat.shape[0]
    n_aligned = _round_up(n, _LANES)
    if n_aligned != n:                                  # small unavoidable copy
        flat = jnp.pad(flat, (0, n_aligned - n), constant_values=pad_value)
    slab = flat.reshape(n_aligned // _LANES, _LANES)    # free for aligned inputs
    if slab.shape[0] < _SUBLANES:                       # tiny inputs only
        slab = jnp.pad(slab, ((0, _SUBLANES - slab.shape[0]), (0, 0)),
                       constant_values=pad_value)
    return slab


def ppg_loss(action_datas, old_action_datas, values, returns,
             *, tile_rows=None, core_splits=None):
    B, A = action_datas.shape
    num_v = values.size
    v7x = _is_v7x()

    if tile_rows is None:
        tile_rows = 4096 if v7x else 2048       # 2 MiB / 1 MiB f32 tiles
    if core_splits is None:
        core_splits = 2 if v7x else 1           # only v7x has 2 TensorCores

    # Lane-dense probability slabs (zero-copy when B*A is 128-aligned).
    new_slab = _lane_dense_slab(action_datas, 1.0)
    old_slab = _lane_dense_slab(old_action_datas, 1.0)
    slab_rows = new_slab.shape[0]

    # Values / returns stay VMEM-resident (no tiling, no padding).
    # TODO(synk): stream values/returns through the grid if they ever exceed a
    # few MiB (huge batches); resident is right for RL-sized batches.
    val2d = values.reshape(1, num_v)
    ret2d = returns.reshape(1, num_v)

    # Row tiling of the reduction axis (block always <= slab, multiple of 8).
    t_rows = _round_up(min(tile_rows, slab_rows), _SUBLANES)
    t_rows = min(t_rows, (slab_rows // _SUBLANES) * _SUBLANES)
    n_blocks = _cdiv(slab_rows, t_rows)

    n_splits = max(1, min(core_splits, n_blocks))
    steps = _cdiv(n_blocks, n_splits)
    covered_rows = n_splits * steps * t_rows
    needs_mask = covered_rows != slab_rows
    two_axis = n_splits > 1
    last_block = n_blocks - 1

    kernel = functools.partial(
        _ppg_loss_kernel,
        slab_rows=slab_rows, t_rows=t_rows, steps_per_split=steps,
        two_axis=two_axis, needs_mask=needs_mask,
        inv_batch=float(1.0 / B), half_inv_num_v=float(0.5 / num_v))

    if two_axis:
        grid = (n_splits, steps)
        prob_spec = pl.BlockSpec(
            (t_rows, _LANES),
            lambda c, s: (jnp.minimum(c * steps + s, last_block), 0))
        v_spec = pl.BlockSpec((1, num_v), lambda c, s: (0, 0))
        out_spec = pl.BlockSpec((_SUBLANES, _LANES), lambda c, s: (c, 0))
        if v7x:
            semantics = (getattr(pltpu, "CORE_PARALLEL", pltpu.ARBITRARY),
                         pltpu.ARBITRARY)
        else:
            semantics = ("arbitrary", "arbitrary")
    else:
        grid = (steps,)
        prob_spec = pl.BlockSpec((t_rows, _LANES), lambda s: (s, 0))
        v_spec = pl.BlockSpec((1, num_v), lambda s: (0, 0))
        out_spec = pl.BlockSpec((_SUBLANES, _LANES), lambda s: (0, 0))
        semantics = ("arbitrary",)

    # On v5e one could additionally pass pipeline_mode=pl.Buffered(3) on the
    # probability specs to ride through DMA issue jitter (optional).
    out = pl.pallas_call(
        kernel,
        out_shape=jax.ShapeDtypeStruct((n_splits * _SUBLANES, _LANES), jnp.float32),
        grid_spec=pltpu.PrefetchScalarGridSpec(
            num_scalar_prefetch=0,
            grid=grid,
            in_specs=[prob_spec, prob_spec, v_spec, v_spec],
            out_specs=out_spec,
            scratch_shapes=[pltpu.VMEM((_SUBLANES, _LANES), jnp.float32),
                            pltpu.VMEM((1, 1), jnp.float32)],
        ),
        compiler_params=pltpu.CompilerParams(
            dimension_semantics=semantics,
            vmem_limit_bytes=(40 if v7x else 32) * 1024 * 1024,
        ),
    )(new_slab, old_slab, val2d, ret2d)

    # Each split wrote its already-normalised partial broadcast over one (8,128)
    # block; pick one element per block and add them (<= 2 partials).
    partials = out.reshape(n_splits, _SUBLANES, _LANES)[:, 0, 0]
    return jnp.sum(partials)


def ppg_loss_ref(action_datas, old_action_datas, values, returns):
    # Pure-JAX reference for validation.
    kl = jnp.sum(
        old_action_datas * (jnp.log(old_action_datas) - jnp.log(action_datas)),
        axis=-1,
    ).mean()
    aux = jnp.mean(0.5 * (returns - values) ** 2)
    return aux + kl


if __name__ == "__main__":
    key = jax.random.PRNGKey(0)
    keys = jax.random.split(key, 12)

    def run_case(ka, ko, kv, kr, B, A, **kw):
        a = jax.nn.softmax(jax.random.normal(ka, (B, A), jnp.float32), -1)
        o = jax.nn.softmax(jax.random.normal(ko, (B, A), jnp.float32), -1)
        v = jax.random.normal(kv, (B, 1), jnp.float32)
        r = jax.random.normal(kr, (B, 1), jnp.float32)
        out = jax.block_until_ready(ppg_loss(a, o, v, r, **kw))
        ref = ppg_loss_ref(a, o, v, r)
        assert jnp.allclose(out, ref, rtol=1e-5, atol=1e-5), (out, ref, B, A, kw)

    # 1) module-typical small shape: 128-aligned -> zero-copy slab, single tile
    run_case(keys[0], keys[1], keys[2], keys[3], 8, 16)
    # 2) ragged grid tail (rows=25, t_rows=8) exercising the in-kernel row mask
    run_case(keys[4], keys[5], keys[6], keys[7], 64, 50, tile_rows=8)
    # 3) unaligned B*A=70 -> minimal pad-to-next-128 fallback path
    run_case(keys[8], keys[9], keys[10], keys[11], 10, 7)
    # 4) two-axis split grid (serial on 1-TC chips, CORE_PARALLEL on v7x)
    run_case(keys[4], keys[5], keys[6], keys[7], 64, 50, tile_rows=8, core_splits=2)

    print("KERNEL_OK")
</pallas_src>

<mosaic_0001>
module attributes {stable_mosaic.version = 11 : i64} {
  func.func @_ppg_loss_kernel(%arg0: i32, %arg1: memref<8x128xf32, #tpu.memory_space<vmem>>, %arg2: memref<8x128xf32, #tpu.memory_space<vmem>>, %arg3: memref<1x8xf32, #tpu.memory_space<vmem>>, %arg4: memref<1x8xf32, #tpu.memory_space<vmem>>, %arg5: memref<8x128xf32, #tpu.memory_space<vmem>>, %arg6: memref<8x128xf32, #tpu.memory_space<vmem>>, %arg7: memref<1x1xf32, #tpu.memory_space<vmem>>) attributes {dimension_semantics = [#tpu.dimension_semantics<arbitrary>], iteration_bounds = array<i64: 1>, scalar_prefetch = 0 : i64, scratch_operands = 2 : i64, tpu.core_type = #tpu.core_type<tc>, window_params = [{transform_indices = @transform_0, window_bounds = array<i64: 8, 128>}, {transform_indices = @transform_1, window_bounds = array<i64: 8, 128>}, {pipeline_mode = #tpu.pipeline_mode<synchronous>, transform_indices = @transform_2, window_bounds = array<i64: 1, 8>}, {pipeline_mode = #tpu.pipeline_mode<synchronous>, transform_indices = @transform_3, window_bounds = array<i64: 1, 8>}, {pipeline_mode = #tpu.pipeline_mode<synchronous>, transform_indices = @transform_4, window_bounds = array<i64: 8, 128>}]} {
    %c0_i32 = arith.constant 0 : i32
    %0 = arith.cmpi eq, %arg0, %c0_i32 : i32
    %1 = arith.extui %0 : i1 to i32
    %c0_i32_0 = arith.constant 0 : i32
    %2 = arith.cmpi ne, %1, %c0_i32_0 : i32
    scf.if %2 {
      %cst_12 = arith.constant 0.000000e+00 : f32
      %20 = vector.broadcast %cst_12 : f32 to vector<8x128xf32>
      %c0_13 = arith.constant 0 : index
      %c0_14 = arith.constant 0 : index
      %21 = vector.load %arg6[%c0_13, %c0_14] : memref<8x128xf32, #tpu.memory_space<vmem>>, vector<8x128xf32>
      tpu.vector_store %arg6[%c0_13, %c0_14], %20 {strides = array<i32>} : memref<8x128xf32, #tpu.memory_space<vmem>>, vector<8x128xf32>,
      %cst_15 = arith.constant 0.000000e+00 : f32
      %22 = vector.broadcast %cst_15 : f32 to vector<1x1xf32>
      %c0_16 = arith.constant 0 : index
      %c0_17 = arith.constant 0 : index
      %23 = vector.load %arg7[%c0_16, %c0_17] : memref<1x1xf32, #tpu.memory_space<vmem>>, vector<1x1xf32>
      tpu.vector_store %arg7[%c0_16, %c0_17], %22 {strides = array<i32>} : memref<1x1xf32, #tpu.memory_space<vmem>>, vector<1x1xf32>,
    } else {
    }
    %c0 = arith.constant 0 : index
    %c0_1 = arith.constant 0 : index
    %3 = vector.load %arg1[%c0, %c0_1] : memref<8x128xf32, #tpu.memory_space<vmem>>, vector<8x128xf32>
    %c0_2 = arith.constant 0 : index
    %c0_3 = arith.constant 0 : index
    %4 = vector.load %arg2[%c0_2, %c0_3] : memref<8x128xf32, #tpu.memory_space<vmem>>, vector<8x128xf32>
    %5 = math.log %4 : vector<8x128xf32>
    %6 = math.log %3 : vector<8x128xf32>
    %7 = arith.subf %5, %6 : vector<8x128xf32>
    %8 = arith.mulf %4, %7 : vector<8x128xf32>
    %c0_4 = arith.constant 0 : index
    %c0_5 = arith.constant 0 : index
    %9 = vector.load %arg6[%c0_4, %c0_5] : memref<8x128xf32, #tpu.memory_space<vmem>>, vector<8x128xf32>
    %10 = vector.shape_cast %8 : vector<8x128xf32> to vector<1x8x128xf32>
    %cst = arith.constant dense<0.000000e+00> : vector<8x128xf32>
    %11 = vector.multi_reduction <add>, %10, %cst [0] : vector<1x8x128xf32> to vector<8x128xf32>
    %12 = arith.addf %9, %11 : vector<8x128xf32>
    %c0_6 = arith.constant 0 : index
    %c0_7 = arith.constant 0 : index
    %13 = vector.load %arg6[%c0_6, %c0_7] : memref<8x128xf32, #tpu.memory_space<vmem>>, vector<8x128xf32>
    tpu.vector_store %arg6[%c0_6, %c0_7], %12 {strides = array<i32>} : memref<8x128xf32, #tpu.memory_space<vmem>>, vector<8x128xf32>,
    %c0_i32_8 = arith.constant 0 : i32
    %14 = arith.cmpi eq, %arg0, %c0_i32_8 : i32
    %15 = arith.extui %14 : i1 to i32
    %c0_i32_9 = arith.constant 0 : i32
    %16 = arith.cmpi ne, %15, %c0_i32_9 : i32
    scf.if %16 {
      %c0_12 = arith.constant 0 : index
      %c0_13 = arith.constant 0 : index
      %20 = vector.load %arg4[%c0_12, %c0_13] : memref<1x8xf32, #tpu.memory_space<vmem>>, vector<1x8xf32>
      %c0_14 = arith.constant 0 : index
      %c0_15 = arith.constant 0 : index
      %21 = vector.load %arg3[%c0_14, %c0_15] : memref<1x8xf32, #tpu.memory_space<vmem>>, vector<1x8xf32>
      %22 = arith.subf %20, %21 : vector<1x8xf32>
      %23 = arith.mulf %22, %22 : vector<1x8xf32>
      %24 = vector.shape_cast %23 : vector<1x8xf32> to vector<1x1x8xf32>
      %cst_16 = arith.constant dense<0.000000e+00> : vector<1xf32>
      %25 = vector.multi_reduction <add>, %24, %cst_16 [1, 2] : vector<1x1x8xf32> to vector<1xf32>
      %26 = vector.shape_cast %25 : vector<1xf32> to vector<1x1x1xf32>
      %27 = vector.extract %26[0, 0, 0] : f32 from vector<1x1x1xf32>
      %28 = vector.broadcast %27 : f32 to vector<1x1xf32>
      %c0_17 = arith.constant 0 : index
      %c0_18 = arith.constant 0 : index
      %29 = vector.load %arg7[%c0_17, %c0_18] : memref<1x1xf32, #tpu.memory_space<vmem>>, vector<1x1xf32>
      tpu.vector_store %arg7[%c0_17, %c0_18], %28 {strides = array<i32>} : memref<1x1xf32, #tpu.memory_space<vmem>>, vector<1x1xf32>,
    } else {
    }
    %c0_i32_10 = arith.constant 0 : i32
    %17 = arith.cmpi eq, %arg0, %c0_i32_10 : i32
    %18 = arith.extui %17 : i1 to i32
    %c0_i32_11 = arith.constant 0 : i32
    %19 = arith.cmpi ne, %18, %c0_i32_11 : i32
    scf.if %19 {
      %c0_12 = arith.constant 0 : index
      %c0_13 = arith.constant 0 : index
      %20 = vector.load %arg6[%c0_12, %c0_13] : memref<8x128xf32, #tpu.memory_space<vmem>>, vector<8x128xf32>
      %21 = vector.shape_cast %20 : vector<8x128xf32> to vector<1x8x128xf32>
      %cst_14 = arith.constant dense<0.000000e+00> : vector<1xf32>
      %22 = vector.multi_reduction <add>, %21, %cst_14 [1, 2] : vector<1x8x128xf32> to vector<1xf32>
      %23 = vector.shape_cast %22 : vector<1xf32> to vector<1x1x1xf32>
      %24 = vector.extract %23[0, 0, 0] : f32 from vector<1x1x1xf32>
      %25 = vector.broadcast %24 : f32 to vector<1x1xf32>
      %cst_15 = arith.constant 1.250000e-01 : f32
      %26 = vector.broadcast %cst_15 : f32 to vector<1x1xf32>
      %27 = arith.mulf %25, %26 : vector<1x1xf32>
      %c0_16 = arith.constant 0 : index
      %c0_17 = arith.constant 0 : index
      %28 = vector.load %arg7[%c0_16, %c0_17] : memref<1x1xf32, #tpu.memory_space<vmem>>, vector<1x1xf32>
      %cst_18 = arith.constant 6.250000e-02 : f32
      %29 = vector.broadcast %cst_18 : f32 to vector<1x1xf32>
      %30 = arith.mulf %28, %29 : vector<1x1xf32>
      %31 = arith.addf %27, %30 : vector<1x1xf32>
      %32 = vector.shape_cast %31 : vector<1x1xf32> to vector<1x1xf32>
      %33 = vector.broadcast %32 : vector<1x1xf32> to vector<8x128xf32>
      %c0_19 = arith.constant 0 : index
      %c0_20 = arith.constant 0 : index
      %34 = vector.load %arg5[%c0_19, %c0_20] : memref<8x128xf32, #tpu.memory_space<vmem>>, vector<8x128xf32>
      tpu.vector_store %arg5[%c0_19, %c0_20], %33 {strides = array<i32>} : memref<8x128xf32, #tpu.memory_space<vmem>>, vector<8x128xf32>,
    } else {
    }
    return
  }
  func.func @transform_0(%arg0: i32) -> (i32, i32) {
    %c0_i32 = arith.constant 0 : i32
    %c0_i32_0 = arith.constant 0 : i32
    return %arg0, %c0_i32 : i32, i32
  }
  func.func @transform_1(%arg0: i32) -> (i32, i32) {
    %c0_i32 = arith.constant 0 : i32
    %c0_i32_0 = arith.constant 0 : i32
    return %arg0, %c0_i32 : i32, i32
  }
  func.func @transform_2(%arg0: i32) -> (i32, i32) {
    %c0_i32 = arith.constant 0 : i32
    %c0_i32_0 = arith.constant 0 : i32
    %c0_i32_1 = arith.constant 0 : i32
    return %c0_i32, %c0_i32_0 : i32, i32
  }
  func.func @transform_3(%arg0: i32) -> (i32, i32) {
    %c0_i32 = arith.constant 0 : i32
    %c0_i32_0 = arith.constant 0 : i32
    %c0_i32_1 = arith.constant 0 : i32
    return %c0_i32, %c0_i32_0 : i32, i32
  }
  func.func @transform_4(%arg0: i32) -> (i32, i32) {
    %c0_i32 = arith.constant 0 : i32
    %c0_i32_0 = arith.constant 0 : i32
    %c0_i32_1 = arith.constant 0 : i32
    return %c0_i32, %c0_i32_0 : i32, i32
  }
}

</mosaic_0001>

<llo_original>
// kernel: tpu_custom_call.1
$region0: #{tpu_custom_call.1}
  #allocation0 [shape = 'u32[]', space=smem, size = 0x4, offset = 0x4, fixed_abs, tag = 'smem constant byte address 0x4 - core index']
  #allocation1 [shape = 'u32[72,128]{1,0:T(1,128)}', space=vmem, size = 0x9000, scoped, tag = 'internal scratch']
  #allocation2 [shape = 'f32[8,128]{1,0:T(8,128)}', space=vmem, size = 0x1000, scoped, tag = 'scratch operand']
  #allocation3 [shape = 'f32[1,1]{1,0:T(1,128)}', space=vmem, size = 0x200, scoped, tag = 'scratch operand']
  %s0 = inlined_call_operand.hbm [shape: f32[8,128], index: 0, kind: input, shape index: {}]
  %s1 = inlined_call_operand.hbm [shape: f32[8,128], index: 1, kind: input, shape index: {}]
  %s2 = inlined_call_operand.vmem [shape: f32[1,8], index: 2, kind: input, shape index: {}]
  %s3 = inlined_call_operand.vmem [shape: f32[1,8], index: 3, kind: input, shape index: {}]
  %s4 = inlined_call_operand.hbm [shape: f32[8,128], index: 4, kind: output, shape index: {}]
  %s5 = sld [smem:[#allocation0]]
  $region42: #{tpu_custom_call.1} parent=0
    _
  %s7 = ssub.s32 1, %s5
  %s8 = scalar_select 0, %s7, %s5
  $region1: #{tpu_custom_call.1} parent=0
    #allocation4 [shape = 'u8[4096]{0}', space=vmem, size = 0x1000, scoped, tag = 'input window, operand 0, single buffered']
    #allocation5 [shape = 's32[1]{0}', space=sflag, size = 0x4, scoped, tag = 'scoped memory for tpu_custom_call.1']
    #allocation6 [shape = 's32[1]{0}', space=sflag, size = 0x4, scoped, tag = 'scoped memory for tpu_custom_call.1']
    #allocation7 [shape = 'u8[4096]{0}', space=vmem, size = 0x1000, scoped, tag = 'input window, operand 1, single buffered']
    #allocation8 [shape = 's32[1]{0}', space=sflag, size = 0x4, scoped, tag = 'scoped memory for tpu_custom_call.1']
    #allocation9 [shape = 'u8[4096]{0}', space=vmem, size = 0x1000, scoped, tag = 'output window, operand 0, single buffered']
    %9 = vsyncpa [#allocation5], 0
    %10 = vsyncpa [#allocation8], 0
    %11 = vsyncpa [#allocation6], 0
    // Predicated region
    $region2: #{tpu_custom_call.1} parent=1 // pred_check
      _
    $region3: #{tpu_custom_call.1} parent=1 // pred_check_branch
      %13 = sbr.rel (0) target = $region5
    $region4: #{tpu_custom_call.1} parent=1 // pred_region
      %15 = vsyncadd [#allocation5], 0
      %s17 = sshll.u32 %s0, 4
      %s18 = int_to_ptr.hbm [resolvable:$true] %s17
      %s19 = sshll.u32 [#allocation4], 4
      %s20 = int_to_ptr.vmem [resolvable:$true] %s19
      %22 = dma.hbm_to_vmem [thread:$0]  %s18, 128, %s20, [#allocation5]
    $region5: #{tpu_custom_call.1} parent=1 // pred_fallthru
      _
    // Predicated region
    $region6: #{tpu_custom_call.1} parent=1 // pred_check
      _
    $region7: #{tpu_custom_call.1} parent=1 // pred_check_branch
      %24 = sbr.rel (0) target = $region9
    $region8: #{tpu_custom_call.1} parent=1 // pred_region
      %26 = vsyncadd [#allocation8], 0
      %s28 = sshll.u32 %s1, 4
      %s29 = int_to_ptr.hbm [resolvable:$true] %s28
      %s30 = sshll.u32 [#allocation7], 4
      %s31 = int_to_ptr.vmem [resolvable:$true] %s30
      %33 = dma.hbm_to_vmem [thread:$0]  %s29, 128, %s31, [#allocation8]
    $region9: #{tpu_custom_call.1} parent=1 // pred_fallthru
      _
    // Predicated region
    $region10: #{tpu_custom_call.1} parent=1 // pred_check
      _
    $region11: #{tpu_custom_call.1} parent=1 // pred_check_branch
      %35 = sbr.rel (0) target = $region13
    $region12: #{tpu_custom_call.1} parent=1 // pred_region
      _
    $region13: #{tpu_custom_call.1} parent=1 // pred_fallthru
      _
    // Predicated region
    $region14: #{tpu_custom_call.1} parent=1 // pred_check
      _
    $region15: #{tpu_custom_call.1} parent=1 // pred_check_branch
      %37 = sbr.rel (0) target = $region17
    $region16: #{tpu_custom_call.1} parent=1 // pred_region
      _
    $region17: #{tpu_custom_call.1} parent=1 // pred_fallthru
      _
    // Predicated region
    $region18: #{tpu_custom_call.1} parent=1 // pred_check
      _
    $region19: #{tpu_custom_call.1} parent=1 // pred_check_branch
      %39 = sbr.rel (0) target = $region21
    $region20: #{tpu_custom_call.1} parent=1 // pred_region
      %41 = dma.done [#allocation5], 128
    $region21: #{tpu_custom_call.1} parent=1 // pred_fallthru
      _
    // Predicated region
    $region22: #{tpu_custom_call.1} parent=1 // pred_check
      _
    $region23: #{tpu_custom_call.1} parent=1 // pred_check_branch
      %43 = sbr.rel (0) target = $region25
    $region24: #{tpu_custom_call.1} parent=1 // pred_region
      %45 = dma.done [#allocation8], 128
    $region25: #{tpu_custom_call.1} parent=1 // pred_fallthru
      _
    %p46 = scmp.eq.s32.totalorder 0, 0
    // Predicated region
    $region26: #{tpu_custom_call.1} parent=1 // pred_check
      %p47 = pneg %p46
    $region27: #{tpu_custom_call.1} parent=1 // pred_check_branch
      %49 = sbr.rel (%p47) target = $region29
    $region28: #{tpu_custom_call.1} parent=1 // pred_region
      %50 = vst [vmem:[#allocation2] sm:$0xff] 0.0
      %vm51 = vcmask 0
      %52 = vst.msk [vmem:[#allocation3] sm:$0x1] %vm51, 0.0
    $region29: #{tpu_custom_call.1} parent=1 // pred_fallthru
      _
    %v53 = vld [vmem:[#allocation4] sm:$0xff]
    %v54 = vld [vmem:[#allocation7] sm:$0xff]
    %v55 = vlog2.pop %v54
    %v56 = vmul.f32 %v55, 0.6931472
    %v57 = vlog2.pop %v53
    %v58 = vmul.f32 %v57, 0.6931472
    %v59 = vsub.f32 %v56, %v58
    %v60 = vmul.f32 %v54, %v59
    %v61 = vld [vmem:[#allocation2] sm:$0xff]
    %v62 = vadd.f32 %v60, 0.0
    %v63 = vadd.f32 %v61, %v62
    %64 = vst [vmem:[#allocation2] sm:$0xff] %v63
    // Predicated region
    $region30: #{tpu_custom_call.1} parent=1 // pred_check
      %p65 = pneg %p46
    $region31: #{tpu_custom_call.1} parent=1 // pred_check_branch
      %67 = sbr.rel (%p65) target = $region33
    $region32: #{tpu_custom_call.1} parent=1 // pred_region
      %v68 = vld [vmem:[%s3] sm:$0x1]
      %v69 = vld [vmem:[%s2] sm:$0x1]
      %v70 = vsub.f32 %v68, %v69
      %v71 = vmul.f32 %v70, %v70
      %vm72 = vcmask 57344
      %v73 = vsel %vm72, %v71, 0.0
      %74 = vadd.xlane.f32.xlu0 %v73
      %v75 = vpop.xlane.xlu0 %74
      %v76 = vrot.slane %v75, 4
      %v77 = vadd.f32 %v75, %v76
      %v78 = vrot.slane %v77, 2
      %v79 = vadd.f32 %v77, %v78
      %v80 = vrot.slane %v79, 1
      %v81 = vadd.f32 %v79, %v80
      %s82 = vtos %v81
      %v83 = vstv %s82
      %vm84 = vcmask 0
      %85 = vst.msk [vmem:[#allocation3] sm:$0x1] %vm84, %v83
      %v86 = vld [vmem:[#allocation2] sm:$0xff]
      %87 = vadd.xlane.f32.xlu0 %v86
      %v88 = vpop.xlane.xlu0 %87
      %v89 = vrot.slane %v88, 4
      %v90 = vadd.f32 %v88, %v89
      %v91 = vrot.slane %v90, 2
      %v92 = vadd.f32 %v90, %v91
      %v93 = vrot.slane %v92, 1
      %v94 = vadd.f32 %v92, %v93
      %s95 = vtos %v94
      %v96 = vstv %s95
      %v97 = vmul.f32 %v96, 0.125
      %v98 = vld [vmem:[#allocation3] sm:$0x1]
      %v99 = vmul.f32 %v98, 0.0625
      %v100 = vadd.f32 %v97, %v99
      %v102 = vperm.slane %v100, 0
      %103 = vset.pattern.permute.xlu0 0
      %104 = vperm.xlu0 %103, %v102
      %v105 = vpop.permute.xlu0 %104
      %107 = vst [vmem:[#allocation9] sm:$0xff] %v105
    $region33: #{tpu_custom_call.1} parent=1 // pred_fallthru
      _
    // Predicated region
    $region34: #{tpu_custom_call.1} parent=1 // pred_check
      _
    $region35: #{tpu_custom_call.1} parent=1 // pred_check_branch
      %109 = sbr.rel (0) target = $region37
    $region36: #{tpu_custom_call.1} parent=1 // pred_region
      %111 = vsyncadd [#allocation6], 0
      %s113 = sshll.u32 [#allocation9], 4
      %s114 = int_to_ptr.vmem [resolvable:$true] %s113
      %s115 = sshll.u32 %s4, 4
      %s116 = int_to_ptr.hbm [resolvable:$true] %s115
      %118 = dma.vmem_to_hbm [thread:$0]  %s114, 128, %s116, [#allocation6]
    $region37: #{tpu_custom_call.1} parent=1 // pred_fallthru
      _
    // Predicated region
    $region38: #{tpu_custom_call.1} parent=1 // pred_check
      _
    $region39: #{tpu_custom_call.1} parent=1 // pred_check_branch
      %120 = sbr.rel (0) target = $region41
    $region40: #{tpu_custom_call.1} parent=1 // pred_region
      %122 = dma.done [#allocation6], 128
    $region41: #{tpu_custom_call.1} parent=1 // pred_fallthru
      _
    %123 = vsyncpa [#allocation5], 1
    %124 = vsyncpa [#allocation8], 1
    %125 = vsyncpa [#allocation6], 1

</llo_original>
